<compile_context>
chip_gen: v6e
topology: v6e:2x2x1
jax: 0.10.0
libtpu: 0.0.40
codegen_flags: <defaults>
</compile_context>

<pallas_src>
import functools
import math

import jax
import jax.numpy as jnp
from jax.experimental import pallas as pl
from jax.experimental.pallas import tpu as pltpu


# ----------------------------- Pallas kernel --------------------------------
def _aa_kernel(x_ref, a_ref, b_ref, o_ref, *, tp):
    # x_ref: (TP, H, W)   TP image planes (one per (n, c) pair)
    # a_ref: (Ho, H)      row-direction Gaussian band matrix (blur + subsample)
    # b_ref: (W, Wo)      col-direction Gaussian band matrix (blur + subsample)
    # o_ref: (TP, Ho, Wo)
    a = a_ref[...]
    b = b_ref[...]
    for p in range(tp):                         # static unroll over planes
        xp = x_ref[p].astype(jnp.float32)       # (H, W)
        t = jnp.dot(xp, b, preferred_element_type=jnp.float32)   # (H, Wo)
        o = jnp.dot(a, t, preferred_element_type=jnp.float32)    # (Ho, Wo)
        o_ref[p] = o.astype(o_ref.dtype)


def _aa_pallas(planes, a_mat, b_mat, tp):
    P, H, W = planes.shape
    Ho, Wo = a_mat.shape[0], b_mat.shape[1]
    flops = 2 * P * (H * W * Wo + Ho * H * Wo)
    bytes_accessed = 4 * (P * H * W + P * Ho * Wo + a_mat.size + b_mat.size)
    kernel = functools.partial(_aa_kernel, tp=tp)
    return pl.pallas_call(
        kernel,
        out_shape=jax.ShapeDtypeStruct((P, Ho, Wo), planes.dtype),
        grid=(P // tp,),
        in_specs=[
            pl.BlockSpec((tp, H, W), lambda i: (i, 0, 0)),
            pl.BlockSpec((Ho, H), lambda i: (0, 0)),   # fetched once, resident
            pl.BlockSpec((W, Wo), lambda i: (0, 0)),   # fetched once, resident
        ],
        out_specs=pl.BlockSpec((tp, Ho, Wo), lambda i: (i, 0, 0)),
        compiler_params=pltpu.CompilerParams(
            dimension_semantics=("parallel",)),
        cost_estimate=pl.CostEstimate(
            flops=flops, transcendentals=0, bytes_accessed=bytes_accessed),
    )(planes, a_mat, b_mat)


# ------------------------------- JAX glue ------------------------------------
def _gaussian_1d(kernel_size, sigma):
    t = jnp.arange(kernel_size, dtype=jnp.float32)
    mean = (kernel_size - 1) / 2.0
    g = jnp.exp(-jnp.square(t - mean) / (2.0 * sigma * sigma))
    # Product of the two normalized 1-D kernels == the normalized 2-D kernel.
    return g / jnp.sum(g)


def _band_matrix(k1d, in_size, out_size, inv_scale, ka):
    """(out_size, in_size): Gaussian taps (zero-padded boundary -> truncated
    band) evaluated only at the nearest-neighbour subsample positions."""
    src = jnp.minimum(
        jnp.floor(jnp.arange(out_size, dtype=jnp.float32) * inv_scale),
        in_size - 1).astype(jnp.int32)                        # (out,)
    tap = jnp.arange(in_size)[None, :] - src[:, None] + ka    # (out, in)
    valid = (tap >= 0) & (tap < k1d.shape[0])
    return jnp.where(valid, k1d[jnp.clip(tap, 0, k1d.shape[0] - 1)],
                     0.0).astype(jnp.float32)


def _choose_tp(num_planes, plane_bytes, unroll_cap=4, vmem_budget=4 << 20):
    """Largest divisor of num_planes within the VMEM budget and unroll cap."""
    cap = max(1, min(unroll_cap, vmem_budget // max(plane_bytes, 1)))
    tp = 1
    for d in range(1, num_planes + 1):
        if num_planes % d == 0 and d <= cap:
            tp = d
    return tp


def anti_alias_interpolation2d(x, scale):
    """Forward pass of AntiAliasInterpolation2d for NCHW input `x`."""
    if scale == 1.0:
        return x
    N, C, H, W = x.shape
    sigma = (1.0 / scale - 1.0) / 2.0
    kernel_size = 2 * round(sigma * 4) + 1
    ka = kernel_size // 2            # kernel_size is odd -> kb == ka
    inv_scale = 1.0 / scale
    Ho = int(math.floor(H * scale))
    Wo = int(math.floor(W * scale))

    k1d = _gaussian_1d(kernel_size, sigma)
    a_mat = _band_matrix(k1d, H, Ho, inv_scale, ka)        # (Ho, H)
    b_mat = _band_matrix(k1d, W, Wo, inv_scale, ka).T      # (W, Wo)

    planes = x.reshape(N * C, H, W)          # free reshape, NCHW is contiguous
    tp = _choose_tp(N * C, H * W * 4)
    out = _aa_pallas(planes, a_mat, b_mat, tp)             # (N*C, Ho, Wo)
    return out.reshape(N, C, Ho, Wo)


# --------------------------- pure-JAX reference -------------------------------
def _reference_forward(x, scale):
    """Direct replica of the PyTorch module (pad + depthwise 2-D conv + nearest)."""
    if scale == 1.0:
        return x
    N, C, H, W = x.shape
    sigma = (1.0 / scale - 1.0) / 2.0
    K = 2 * round(sigma * 4) + 1
    ka = K // 2
    kb = ka
    t = jnp.arange(K, dtype=jnp.float32)
    mean = (K - 1) / 2.0
    g = jnp.exp(-jnp.square(t - mean) / (2.0 * sigma * sigma))
    k2d = g[:, None] * g[None, :]
    k2d = k2d / jnp.sum(k2d)
    w = jnp.tile(k2d[None, None], (C, 1, 1, 1))            # (C, 1, K, K)
    xp = jnp.pad(x, ((0, 0), (0, 0), (ka, kb), (ka, kb)))
    conv = jax.lax.conv_general_dilated(
        xp, w, window_strides=(1, 1), padding="VALID",
        dimension_numbers=("NCHW", "OIHW", "NCHW"),
        feature_group_count=C, precision=jax.lax.Precision.HIGHEST)
    Ho = int(math.floor(H * scale))
    Wo = int(math.floor(W * scale))
    hi = jnp.minimum(jnp.floor(jnp.arange(Ho) * (1.0 / scale)), H - 1).astype(jnp.int32)
    wi = jnp.minimum(jnp.floor(jnp.arange(Wo) * (1.0 / scale)), W - 1).astype(jnp.int32)
    return conv[:, :, hi][:, :, :, wi]


# --------------------------------- main --------------------------------------
if __name__ == "__main__":
    key = jax.random.PRNGKey(0)
    x = jax.random.normal(key, (2, 4, 16, 16), jnp.float32)
    scale = 0.25      # FOMM's usual anti-alias scale: sigma=1.5, 13x13 kernel

    out = anti_alias_interpolation2d(x, scale)
    jax.block_until_ready(out)
    assert out.shape == (2, 4, 4, 4), out.shape

    ref = _reference_forward(x, scale)
    err = float(jnp.max(jnp.abs(out - ref)))
    assert err < 1e-4, f"max abs error vs reference: {err}"

    # scale == 1.0 is an identity shortcut, exactly as in the PyTorch module.
    assert anti_alias_interpolation2d(x, 1.0) is x

    print("KERNEL_OK")
</pallas_src>

<mosaic_0001>
module attributes {stable_mosaic.version = 11 : i64} {
  func.func @_aa_kernel(%arg0: i32, %arg1: memref<4x16x16xf32, #tpu.memory_space<vmem>>, %arg2: memref<4x16xf32, #tpu.memory_space<vmem>>, %arg3: memref<16x4xf32, #tpu.memory_space<vmem>>, %arg4: memref<4x4x4xf32, #tpu.memory_space<vmem>>) attributes {dimension_semantics = [#tpu.dimension_semantics<parallel>], iteration_bounds = array<i64: 2>, scalar_prefetch = 0 : i64, scratch_operands = 0 : i64, tpu.core_type = #tpu.core_type<tc>, window_params = [{transform_indices = @transform_0, window_bounds = array<i64: 4, 16, 16>}, {pipeline_mode = #tpu.pipeline_mode<synchronous>, transform_indices = @transform_1, window_bounds = array<i64: 4, 16>}, {pipeline_mode = #tpu.pipeline_mode<synchronous>, transform_indices = @transform_2, window_bounds = array<i64: 16, 4>}, {transform_indices = @transform_3, window_bounds = array<i64: 4, 4, 4>}]} {
    %c0 = arith.constant 0 : index
    %c0_0 = arith.constant 0 : index
    %0 = vector.load %arg2[%c0, %c0_0] : memref<4x16xf32, #tpu.memory_space<vmem>>, vector<4x16xf32>
    %c0_1 = arith.constant 0 : index
    %c0_2 = arith.constant 0 : index
    %1 = vector.load %arg3[%c0_1, %c0_2] : memref<16x4xf32, #tpu.memory_space<vmem>>, vector<16x4xf32>
    %c0_3 = arith.constant 0 : index
    %c0_4 = arith.constant 0 : index
    %c0_5 = arith.constant 0 : index
    %2 = vector.load %arg1[%c0_3, %c0_4, %c0_5] : memref<4x16x16xf32, #tpu.memory_space<vmem>>, vector<1x16x16xf32>
    %3 = vector.shape_cast %2 : vector<1x16x16xf32> to vector<16x16xf32>
    %cst = arith.constant dense<0.000000e+00> : vector<16x4xf32>
    %4 = tpu.matmul %3, %1, %cst {dimension_numbers = #tpu.dot_dimension_numbers<[1], [0], [0], [1], [0, 0, 1, 1], [], []>} : vector<16x16xf32>, vector<16x4xf32>, vector<16x4xf32> -> vector<16x4xf32>
    %cst_6 = arith.constant dense<0.000000e+00> : vector<4x4xf32>
    %5 = tpu.matmul %0, %4, %cst_6 {dimension_numbers = #tpu.dot_dimension_numbers<[1], [0], [0], [1], [0, 0, 1, 1], [], []>} : vector<4x16xf32>, vector<16x4xf32>, vector<4x4xf32> -> vector<4x4xf32>
    %c0_7 = arith.constant 0 : index
    %c0_8 = arith.constant 0 : index
    %c0_9 = arith.constant 0 : index
    %6 = vector.load %arg4[%c0_7, %c0_8, %c0_9] : memref<4x4x4xf32, #tpu.memory_space<vmem>>, vector<1x4x4xf32>
    %7 = vector.shape_cast %6 : vector<1x4x4xf32> to vector<4x4xf32>
    %8 = vector.shape_cast %5 : vector<4x4xf32> to vector<1x4x4xf32>
    tpu.vector_store %arg4[%c0_7, %c0_8, %c0_9], %8 {strides = array<i32>} : memref<4x4x4xf32, #tpu.memory_space<vmem>>, vector<1x4x4xf32>,
    %c1 = arith.constant 1 : index
    %c0_10 = arith.constant 0 : index
    %c0_11 = arith.constant 0 : index
    %9 = vector.load %arg1[%c1, %c0_10, %c0_11] : memref<4x16x16xf32, #tpu.memory_space<vmem>>, vector<1x16x16xf32>
    %10 = vector.shape_cast %9 : vector<1x16x16xf32> to vector<16x16xf32>
    %cst_12 = arith.constant dense<0.000000e+00> : vector<16x4xf32>
    %11 = tpu.matmul %10, %1, %cst_12 {dimension_numbers = #tpu.dot_dimension_numbers<[1], [0], [0], [1], [0, 0, 1, 1], [], []>} : vector<16x16xf32>, vector<16x4xf32>, vector<16x4xf32> -> vector<16x4xf32>
    %cst_13 = arith.constant dense<0.000000e+00> : vector<4x4xf32>
    %12 = tpu.matmul %0, %11, %cst_13 {dimension_numbers = #tpu.dot_dimension_numbers<[1], [0], [0], [1], [0, 0, 1, 1], [], []>} : vector<4x16xf32>, vector<16x4xf32>, vector<4x4xf32> -> vector<4x4xf32>
    %c1_14 = arith.constant 1 : index
    %c0_15 = arith.constant 0 : index
    %c0_16 = arith.constant 0 : index
    %13 = vector.load %arg4[%c1_14, %c0_15, %c0_16] : memref<4x4x4xf32, #tpu.memory_space<vmem>>, vector<1x4x4xf32>
    %14 = vector.shape_cast %13 : vector<1x4x4xf32> to vector<4x4xf32>
    %15 = vector.shape_cast %12 : vector<4x4xf32> to vector<1x4x4xf32>
    tpu.vector_store %arg4[%c1_14, %c0_15, %c0_16], %15 {strides = array<i32>} : memref<4x4x4xf32, #tpu.memory_space<vmem>>, vector<1x4x4xf32>,
    %c2 = arith.constant 2 : index
    %c0_17 = arith.constant 0 : index
    %c0_18 = arith.constant 0 : index
    %16 = vector.load %arg1[%c2, %c0_17, %c0_18] : memref<4x16x16xf32, #tpu.memory_space<vmem>>, vector<1x16x16xf32>
    %17 = vector.shape_cast %16 : vector<1x16x16xf32> to vector<16x16xf32>
    %cst_19 = arith.constant dense<0.000000e+00> : vector<16x4xf32>
    %18 = tpu.matmul %17, %1, %cst_19 {dimension_numbers = #tpu.dot_dimension_numbers<[1], [0], [0], [1], [0, 0, 1, 1], [], []>} : vector<16x16xf32>, vector<16x4xf32>, vector<16x4xf32> -> vector<16x4xf32>
    %cst_20 = arith.constant dense<0.000000e+00> : vector<4x4xf32>
    %19 = tpu.matmul %0, %18, %cst_20 {dimension_numbers = #tpu.dot_dimension_numbers<[1], [0], [0], [1], [0, 0, 1, 1], [], []>} : vector<4x16xf32>, vector<16x4xf32>, vector<4x4xf32> -> vector<4x4xf32>
    %c2_21 = arith.constant 2 : index
    %c0_22 = arith.constant 0 : index
    %c0_23 = arith.constant 0 : index
    %20 = vector.load %arg4[%c2_21, %c0_22, %c0_23] : memref<4x4x4xf32, #tpu.memory_space<vmem>>, vector<1x4x4xf32>
    %21 = vector.shape_cast %20 : vector<1x4x4xf32> to vector<4x4xf32>
    %22 = vector.shape_cast %19 : vector<4x4xf32> to vector<1x4x4xf32>
    tpu.vector_store %arg4[%c2_21, %c0_22, %c0_23], %22 {strides = array<i32>} : memref<4x4x4xf32, #tpu.memory_space<vmem>>, vector<1x4x4xf32>,
    %c3 = arith.constant 3 : index
    %c0_24 = arith.constant 0 : index
    %c0_25 = arith.constant 0 : index
    %23 = vector.load %arg1[%c3, %c0_24, %c0_25] : memref<4x16x16xf32, #tpu.memory_space<vmem>>, vector<1x16x16xf32>
    %24 = vector.shape_cast %23 : vector<1x16x16xf32> to vector<16x16xf32>
    %cst_26 = arith.constant dense<0.000000e+00> : vector<16x4xf32>
    %25 = tpu.matmul %24, %1, %cst_26 {dimension_numbers = #tpu.dot_dimension_numbers<[1], [0], [0], [1], [0, 0, 1, 1], [], []>} : vector<16x16xf32>, vector<16x4xf32>, vector<16x4xf32> -> vector<16x4xf32>
    %cst_27 = arith.constant dense<0.000000e+00> : vector<4x4xf32>
    %26 = tpu.matmul %0, %25, %cst_27 {dimension_numbers = #tpu.dot_dimension_numbers<[1], [0], [0], [1], [0, 0, 1, 1], [], []>} : vector<4x16xf32>, vector<16x4xf32>, vector<4x4xf32> -> vector<4x4xf32>
    %c3_28 = arith.constant 3 : index
    %c0_29 = arith.constant 0 : index
    %c0_30 = arith.constant 0 : index
    %27 = vector.load %arg4[%c3_28, %c0_29, %c0_30] : memref<4x4x4xf32, #tpu.memory_space<vmem>>, vector<1x4x4xf32>
    %28 = vector.shape_cast %27 : vector<1x4x4xf32> to vector<4x4xf32>
    %29 = vector.shape_cast %26 : vector<4x4xf32> to vector<1x4x4xf32>
    tpu.vector_store %arg4[%c3_28, %c0_29, %c0_30], %29 {strides = array<i32>} : memref<4x4x4xf32, #tpu.memory_space<vmem>>, vector<1x4x4xf32>,
    return
  }
  func.func @transform_0(%arg0: i32) -> (i32, i32, i32) {
    %c0_i32 = arith.constant 0 : i32
    %c0_i32_0 = arith.constant 0 : i32
    %c0_i32_1 = arith.constant 0 : i32
    return %arg0, %c0_i32, %c0_i32_0 : i32, i32, i32
  }
  func.func @transform_1(%arg0: i32) -> (i32, i32) {
    %c0_i32 = arith.constant 0 : i32
    %c0_i32_0 = arith.constant 0 : i32
    %c0_i32_1 = arith.constant 0 : i32
    return %c0_i32, %c0_i32_0 : i32, i32
  }
  func.func @transform_2(%arg0: i32) -> (i32, i32) {
    %c0_i32 = arith.constant 0 : i32
    %c0_i32_0 = arith.constant 0 : i32
    %c0_i32_1 = arith.constant 0 : i32
    return %c0_i32, %c0_i32_0 : i32, i32
  }
  func.func @transform_3(%arg0: i32) -> (i32, i32, i32) {
    %c0_i32 = arith.constant 0 : i32
    %c0_i32_0 = arith.constant 0 : i32
    %c0_i32_1 = arith.constant 0 : i32
    return %arg0, %c0_i32, %c0_i32_0 : i32, i32, i32
  }
}

</mosaic_0001>

<llo_original>
// kernel: tpu_custom_call.1
$region0: #{tpu_custom_call.1}
  #allocation0 [shape = 'u32[]', space=smem, size = 0x4, offset = 0x4, fixed_abs, tag = 'smem constant byte address 0x4 - core index']
  #allocation1 [shape = 'u32[144,128]{1,0:T(1,128)}', space=vmem, size = 0x12000, scoped, tag = 'internal scratch']
  %s0 = inlined_call_operand.hbm [shape: f32[8,16,16], index: 0, kind: input, shape index: {}]
  %s1 = inlined_call_operand.vmem [shape: f32[4,16], index: 1, kind: input, shape index: {}]
  %s2 = inlined_call_operand.vmem [shape: f32[16,4], index: 2, kind: input, shape index: {}]
  %s3 = inlined_call_operand.vmem [shape: f32[8,4,4], index: 3, kind: output, shape index: {}]
  %s4 = sld [smem:[#allocation0]]
  $region49: #{tpu_custom_call.1} parent=0
    _
  %s6 = ssub.s32 1, %s4
  %s7 = scalar_select 0, %s6, %s4
  $region1: #{tpu_custom_call.1} parent=0
    #allocation2 [shape = 'u8[65536]{0}', space=vmem, size = 0x10000, scoped, tag = 'input window, operand 0']
    #allocation3 [shape = 's32[2]{0}', space=sflag, size = 0x8, scoped, tag = 'scoped memory for tpu_custom_call.1']
    %8 = vsyncpa [#allocation3], 0
    %s9 = scalar_lea.sflag [#allocation3], 1
    %10 = vsyncpa %s9, 0
    loop: start=0, step=1, limit=4
    $region2: #{tpu_custom_call.1} parent=1 // loop_pre_header
      _
    $region3: #{tpu_custom_call.1} parent=1 // loop_header
      %s12 = sphi 0, %s16
      %p13 = scmp.ge.s32.totalorder %s12, 4
      %s22 = sphi 0, %s24
      %s25 = sphi 0, %s22
      %s26 = sphi 0, %s25
      %s42 = sphi 0, %s26
      %s46 = sphi 0, %s46
      %s48 = sphi 0, %s46
      %s49 = sphi 0, %s48
      %s63 = sphi 0, %s49
      %s67 = sphi 0, %s67
      %s69 = sphi 0, %s67
      %s70 = sphi 0, %s69
      %s84 = sphi 0, %s70
      %s90 = sphi 0, %s92
      %s93 = sphi 0, %s90
      %s94 = sphi 0, %s93
      %s110 = sphi 0, %s94
    $region4: #{tpu_custom_call.1} parent=1 // loop_header_branch
      %15 = sbr.rel (%p13) target = $region8
    $region5: #{tpu_custom_call.1} parent=1 // loop_body
      %s17 = ssub.s32 %s12, 1
      %s18 = ssub.s32 %s12, 2
      %s19 = sadd.s32 %s12, 1
      %s20 = ssub.s32 %s12, %s19
      %p21 = scmp.eq.s32.totalorder %s20, 0
      %s23 = sadd.s32 %s22, 1
      %s24 = scalar_select %p21, %s22, %s23
      %p27 = pneg %p21
      %p28 = scmp.eq.s32.totalorder %s12, 1
      %p29 = por %p27, %p28
      %p30 = scmp.ne.s32.totalorder %s22, %s25
      %p31 = scmp.eq.s32.totalorder %s12, 0
      %p32 = por %p30, %p31
      %p33 = scmp.ne.s32.totalorder %s22, %s25
      %p34 = scmp.eq.s32.totalorder %s17, 1
      %p35 = por %p33, %p34
      %p36 = scmp.ne.s32.totalorder %s25, %s26
      %p37 = scmp.eq.s32.totalorder %s17, 0
      %p38 = por %p36, %p37
      %p39 = scmp.ne.s32.totalorder %s25, %s26
      %p40 = scmp.eq.s32.totalorder %s18, 1
      %p41 = por %p39, %p40
      %p43 = scmp.ne.s32.totalorder %s26, %s42
      %p44 = scmp.eq.s32.totalorder %s18, 0
      %p45 = por %p43, %p44
      %s47 = sadd.s32 %s46, 1
      %p50 = scmp.eq.s32.totalorder %s12, 1
      %p51 = scmp.ne.s32.totalorder %s46, %s48
      %p52 = scmp.eq.s32.totalorder %s12, 0
      %p53 = por %p51, %p52
      %p54 = scmp.ne.s32.totalorder %s46, %s48
      %p55 = scmp.eq.s32.totalorder %s17, 1
      %p56 = por %p54, %p55
      %p57 = scmp.ne.s32.totalorder %s48, %s49
      %p58 = scmp.eq.s32.totalorder %s17, 0
      %p59 = por %p57, %p58
      %p60 = scmp.ne.s32.totalorder %s48, %s49
      %p61 = scmp.eq.s32.totalorder %s18, 1
      %p62 = por %p60, %p61
      %p64 = scmp.ne.s32.totalorder %s49, %s63
      %p65 = scmp.eq.s32.totalorder %s18, 0
      %p66 = por %p64, %p65
      %s68 = sadd.s32 %s67, 1
      %p71 = scmp.eq.s32.totalorder %s12, 1
      %p72 = scmp.ne.s32.totalorder %s67, %s69
      %p73 = scmp.eq.s32.totalorder %s12, 0
      %p74 = por %p72, %p73
      %p75 = scmp.ne.s32.totalorder %s67, %s69
      %p76 = scmp.eq.s32.totalorder %s17, 1
      %p77 = por %p75, %p76
      %p78 = scmp.ne.s32.totalorder %s69, %s70
      %p79 = scmp.eq.s32.totalorder %s17, 0
      %p80 = por %p78, %p79
      %p81 = scmp.ne.s32.totalorder %s69, %s70
      %p82 = scmp.eq.s32.totalorder %s18, 1
      %p83 = por %p81, %p82
      %p85 = scmp.ne.s32.totalorder %s70, %s84
      %p86 = scmp.eq.s32.totalorder %s18, 0
      %p87 = por %p85, %p86
      %s88 = ssub.s32 %s12, %s19
      %p89 = scmp.eq.s32.totalorder %s88, 0
      %s91 = sadd.s32 %s90, 1
      %s92 = scalar_select %p89, %s90, %s91
      %p95 = pneg %p89
      %p96 = scmp.eq.s32.totalorder %s12, 1
      %p97 = por %p95, %p96
      %p98 = scmp.ne.s32.totalorder %s90, %s93
      %p99 = scmp.eq.s32.totalorder %s12, 0
      %p100 = por %p98, %p99
      %p101 = scmp.ne.s32.totalorder %s90, %s93
      %p102 = scmp.eq.s32.totalorder %s17, 1
      %p103 = por %p101, %p102
      %p104 = scmp.ne.s32.totalorder %s93, %s94
      %p105 = scmp.eq.s32.totalorder %s17, 0
      %p106 = por %p104, %p105
      %p107 = scmp.ne.s32.totalorder %s93, %s94
      %p108 = scmp.eq.s32.totalorder %s18, 1
      %p109 = por %p107, %p108
      %p111 = scmp.ne.s32.totalorder %s94, %s110
      %p112 = scmp.eq.s32.totalorder %s18, 0
      %p113 = por %p111, %p112
      %p114 = scmp.le.s32.totalorder 1, %s12
      %p115 = scmp.lt.s32.totalorder %s12, 3
      %p116 = pnand %p114, %p115
      %p117 = pneg %p116
      // Predicated region
      $region9: #{tpu_custom_call.1} parent=5 // pred_check
        _
      $region10: #{tpu_custom_call.1} parent=5 // pred_check_branch
        %119 = sbr.rel (%p116) target = $region12
      $region11: #{tpu_custom_call.1} parent=5 // pred_region
        %s120 = ssub.s32 %s12, 1
        // Predicated region
        $region13: #{tpu_custom_call.1} parent=11 // pred_check
          %p121 = pneg %p59
        $region14: #{tpu_custom_call.1} parent=11 // pred_check_branch
          %123 = sbr.rel (%p121) target = $region16
        $region15: #{tpu_custom_call.1} parent=11 // pred_region
          _
        $region16: #{tpu_custom_call.1} parent=11 // pred_fallthru
          _
        // Predicated region
        $region17: #{tpu_custom_call.1} parent=11 // pred_check
          %p124 = pneg %p80
        $region18: #{tpu_custom_call.1} parent=11 // pred_check_branch
          %126 = sbr.rel (%p124) target = $region20
        $region19: #{tpu_custom_call.1} parent=11 // pred_region
          _
        $region20: #{tpu_custom_call.1} parent=11 // pred_fallthru
          _
      $region12: #{tpu_custom_call.1} parent=5 // pred_fallthru
        _
      %p127 = scmp.lt.s32.totalorder %s12, 2
      // Predicated region
      $region21: #{tpu_custom_call.1} parent=5 // pred_check
        %p128 = pneg %p127
      $region22: #{tpu_custom_call.1} parent=5 // pred_check_branch
        %130 = sbr.rel (%p128) target = $region24
      $region23: #{tpu_custom_call.1} parent=5 // pred_region
        // Predicated region
        $region25: #{tpu_custom_call.1} parent=23 // pred_check
          %p131 = pneg %p32
        $region26: #{tpu_custom_call.1} parent=23 // pred_check_branch
          %133 = sbr.rel (%p131) target = $region28
        $region27: #{tpu_custom_call.1} parent=23 // pred_region
          %s134 = sand.u32 %s22, 1
          %s135 = scalar_lea.sflag [#allocation3], %s134
          %s136 = sand.u32 %s22, 1
          %s137 = smul.addr %s136, 64
          %s138 = scalar_lea.vmem [#allocation2], %s137
          %s139 = smul.u32 4, %s12
          %s141 = ssub.s32 1024, 1024
          %142 = vsyncadd %s135, %s141
          %s143 = smul.addr %s139, 2
          %s144 = smul.addr %s143, 128
          %s145 = scalar_lea.hbm %s0, %s144
          %s146 = sshll.u32 %s138, 4
          %s147 = int_to_ptr.vmem [resolvable:$true] %s146
          %152 = dma.hbm_to_vmem [thread:$0]  %s145, 1024, %s147, %s135, 128, 128, 8
        $region28: #{tpu_custom_call.1} parent=23 // pred_fallthru
          _
      $region24: #{tpu_custom_call.1} parent=5 // pred_fallthru
        _
      %p153 = scmp.le.s32.totalorder 1, %s12
      %p154 = scmp.lt.s32.totalorder %s12, 3
      %p155 = pnand %p153, %p154
      %p156 = pneg %p155
      // Predicated region
      $region29: #{tpu_custom_call.1} parent=5 // pred_check
        _
      $region30: #{tpu_custom_call.1} parent=5 // pred_check_branch
        %158 = sbr.rel (%p155) target = $region32
      $region31: #{tpu_custom_call.1} parent=5 // pred_region
        %s159 = ssub.s32 %s12, 1
        %s160 = sand.u32 %s25, 1
        %s161 = scalar_lea.sflag [#allocation3], %s160
        %s162 = sand.u32 %s25, 1
        %s163 = smul.addr %s162, 64
        %s164 = scalar_lea.vmem [#allocation2], %s163
        // Predicated region
        $region33: #{tpu_custom_call.1} parent=31 // pred_check
          %p165 = pneg %p38
        $region34: #{tpu_custom_call.1} parent=31 // pred_check_branch
          %167 = sbr.rel (%p165) target = $region36
        $region35: #{tpu_custom_call.1} parent=31 // pred_region
          %168 = dma.done %s161, 1024
        $region36: #{tpu_custom_call.1} parent=31 // pred_fallthru
          _
        %s169 = sand.u32 %s25, 1
        %s170 = scalar_lea.sflag [#allocation3], %s169
        %s171 = sand.u32 %s25, 1
        %s172 = smul.addr %s171, 64
        %s173 = scalar_lea.vmem [#allocation2], %s172
        %p174 = pneg %p38
        %p175 = pneg %p35
        %p176 = pneg %p59
        %p177 = pneg %p56
        %p178 = pneg %p80
        %p179 = pneg %p77
        %p180 = pneg %p106
        %p181 = pneg %p103
        %s182 = smul.u32 4, %s17
        %p183 = scmp.lt.s32.totalorder %s182, 7
        %s184 = scalar_select %p183, %s182, 7
        %s185 = smul.addr %s184, 4
        %s186 = scalar_lea.vmem %s3, %s185
        %s187 = smul.u32 4, %s17
        %s188 = smul.u32 4, %s17
        %p189 = scmp.lt.s32.totalorder %s188, 7
        %s190 = scalar_select %p189, %s188, 7
        %s191 = smul.addr %s190, 4
        %s192 = scalar_lea.vmem %s3, %s191
        %s193 = smul.u32 4, %s17
        %v194 = vld [vmem:[%s1] sm:$0xf]
        %v195 = vld [vmem:[%s2] sm:$0xff]
        %v196 = vld [vmem:[%s2 + $0x8] sm:$0xff]
        %v197 = vld [vmem:[%s164] sm:$0xff]
        %v198 = vld [vmem:[%s164 + $0x8] sm:$0xff]
        %vm199 = vcmask 130048
        %v201 = vsel %vm199, %v197, 0
        %v204 = vsel %vm199, %v198, 0
        %206 = vmatprep.subr.mxu0 0.0
        %207 = vmatpush1.msra.mxu0 0.0
        %208 = vmatprep.subr.mxu0 0.0
        %209 = vmatpush1.msra.mxu0 0.0
        %210 = vmatprep.subr.mxu0 0.0
        %211 = vmatpush1.msra.mxu0 0.0
        %212 = vmatprep.subr.mxu0 0.0
        %213 = vmatpush1.msra.mxu0 0.0
        %214 = vmatprep.subr.mxu0 0.0
        %215 = vmatpush1.msra.mxu0 0.0
        %216 = vmatprep.subr.mxu0 0.0
        %217 = vmatpush1.msra.mxu0 0.0
        %218 = vmatprep.subr.mxu0 0.0
        %219 = vmatpush1.msra.mxu0 0.0
        %220 = vmatprep.subr.mxu0 0.0
        %221 = vmatpush1.msra.mxu0 0.0
        %222 = vmatprep.subr.mxu0 0.0
        %223 = vmatpush1.msra.mxu0 0.0
        %224 = vmatprep.subr.mxu0 0.0
        %225 = vmatpush1.msra.mxu0 0.0
        %226 = vmatprep.subr.mxu0 0.0
        %227 = vmatpush1.msra.mxu0 0.0
        %228 = vmatprep.subr.mxu0 0.0
        %229 = vmatpush1.msra.mxu0 0.0
        %230 = vmatprep.subr.mxu0 0.0
        %231 = vmatpush1.msra.mxu0 0.0
        %232 = vmatprep.subr.mxu0 0.0
        %233 = vmatpush1.msra.mxu0 0.0
        %234 = vmatprep.subr.mxu0 0.0
        %235 = vmatpush1.msra.mxu0 %v196
        %236 = vmatprep.subr.mxu0 0.0
        %237 = vmatpush1.msra.mxu0 %v195
        %238 = vmatprep.subr.mxu0 0.0
        %239 = vmatpush2.msra.mxu0 0.0
        %240 = vmatprep.subr.mxu0 0.0
        %241 = vmatpush2.msra.mxu0 0.0
        %242 = vmatprep.subr.mxu0 0.0
        %243 = vmatpush2.msra.mxu0 0.0
        %244 = vmatprep.subr.mxu0 0.0
        %245 = vmatpush2.msra.mxu0 0.0
        %246 = vmatprep.subr.mxu0 0.0
        %247 = vmatpush2.msra.mxu0 0.0
        %248 = vmatprep.subr.mxu0 0.0
        %249 = vmatpush2.msra.mxu0 0.0
        %250 = vmatprep.subr.mxu0 0.0
        %251 = vmatpush2.msra.mxu0 0.0
        %252 = vmatprep.subr.mxu0 0.0
        %253 = vmatpush2.msra.mxu0 0.0
        %254 = vmatprep.subr.mxu0 0.0
        %255 = vmatpush2.msra.mxu0 0.0
        %256 = vmatprep.subr.mxu0 0.0
        %257 = vmatpush2.msra.mxu0 0.0
        %258 = vmatprep.subr.mxu0 0.0
        %259 = vmatpush2.msra.mxu0 0.0
        %260 = vmatprep.subr.mxu0 0.0
        %261 = vmatpush2.msra.mxu0 0.0
        %262 = vmatprep.subr.mxu0 0.0
        %263 = vmatpush2.msra.mxu0 0.0
        %264 = vmatprep.subr.mxu0 0.0
        %265 = vmatpush2.msra.mxu0 0.0
        %266 = vmatprep.subr.mxu0 0.0
        %267 = vmatpush2.msra.mxu0 0.0
        %268 = vmatprep.subr.mxu0 0.0
        %269 = vmatpush2.msra.mxu0 0.0
        %270 = vmatprep.mubr.f32.mxu0 0.0
        %271 = vmatmul.mubr.f32.gmra.mxu0 %v201
        %v272 = vpop.f32.mrf.mxu0
        %v273 = vadd.f32 0.0, %v272
        %v274 = vpop.f32.mrf.mxu0
        %275 = vmatprep.mubr.f32.mxu0 0.0
        %276 = vmatmul.mubr.f32.gmra.mxu0 %v204
        %v277 = vpop.f32.mrf.mxu0
        %v278 = vadd.f32 0.0, %v277
        %v279 = vpop.f32.mrf.mxu0
        %280 = vdwg.mxu0
        %v282 = vsel %vm199, %v194, 0
        %284 = vmatprep.subr.mxu0 0.0
        %285 = vmatpush1.msra.mxu0 0.0
        %286 = vmatprep.subr.mxu0 0.0
        %287 = vmatpush1.msra.mxu0 0.0
        %288 = vmatprep.subr.mxu0 0.0
        %289 = vmatpush1.msra.mxu0 0.0
        %290 = vmatprep.subr.mxu0 0.0
        %291 = vmatpush1.msra.mxu0 0.0
        %292 = vmatprep.subr.mxu0 0.0
        %293 = vmatpush1.msra.mxu0 0.0
        %294 = vmatprep.subr.mxu0 0.0
        %295 = vmatpush1.msra.mxu0 0.0
        %296 = vmatprep.subr.mxu0 0.0
        %297 = vmatpush1.msra.mxu0 0.0
        %298 = vmatprep.subr.mxu0 0.0
        %299 = vmatpush1.msra.mxu0 0.0
        %300 = vmatprep.subr.mxu0 0.0
        %301 = vmatpush1.msra.mxu0 0.0
        %302 = vmatprep.subr.mxu0 0.0
        %303 = vmatpush1.msra.mxu0 0.0
        %304 = vmatprep.subr.mxu0 0.0
        %305 = vmatpush1.msra.mxu0 0.0
        %306 = vmatprep.subr.mxu0 0.0
        %307 = vmatpush1.msra.mxu0 0.0
        %308 = vmatprep.subr.mxu0 0.0
        %309 = vmatpush1.msra.mxu0 0.0
        %310 = vmatprep.subr.mxu0 0.0
        %311 = vmatpush1.msra.mxu0 0.0
        %312 = vmatprep.subr.mxu0 0.0
        %313 = vmatpush1.msra.mxu0 %v278
        %314 = vmatprep.subr.mxu0 0.0
        %315 = vmatpush1.msra.mxu0 %v273
        %316 = vmatprep.subr.mxu0 0.0
        %317 = vmatpush2.msra.mxu0 0.0
        %318 = vmatprep.subr.mxu0 0.0
        %319 = vmatpush2.msra.mxu0 0.0
        %320 = vmatprep.subr.mxu0 0.0
        %321 = vmatpush2.msra.mxu0 0.0
        %322 = vmatprep.subr.mxu0 0.0
        %323 = vmatpush2.msra.mxu0 0.0
        %324 = vmatprep.subr.mxu0 0.0
        %325 = vmatpush2.msra.mxu0 0.0
        %326 = vmatprep.subr.mxu0 0.0
        %327 = vmatpush2.msra.mxu0 0.0
        %328 = vmatprep.subr.mxu0 0.0
        %329 = vmatpush2.msra.mxu0 0.0
        %330 = vmatprep.subr.mxu0 0.0
        %331 = vmatpush2.msra.mxu0 0.0
        %332 = vmatprep.subr.mxu0 0.0
        %333 = vmatpush2.msra.mxu0 0.0
        %334 = vmatprep.subr.mxu0 0.0
        %335 = vmatpush2.msra.mxu0 0.0
        %336 = vmatprep.subr.mxu0 0.0
        %337 = vmatpush2.msra.mxu0 0.0
        %338 = vmatprep.subr.mxu0 0.0
        %339 = vmatpush2.msra.mxu0 0.0
        %340 = vmatprep.subr.mxu0 0.0
        %341 = vmatpush2.msra.mxu0 0.0
        %342 = vmatprep.subr.mxu0 0.0
        %343 = vmatpush2.msra.mxu0 0.0
        %344 = vmatprep.subr.mxu0 0.0
        %345 = vmatpush2.msra.mxu0 0.0
        %346 = vmatprep.subr.mxu0 0.0
        %347 = vmatpush2.msra.mxu0 0.0
        %348 = vmatprep.mubr.f32.mxu0 0.0
        %349 = vmatmul.mubr.f32.gmra.mxu0 %v282
        %v350 = vpop.f32.mrf.mxu0
        %v351 = vadd.f32 0.0, %v350
        %v352 = vpop.f32.mrf.mxu0
        %353 = vdwg.mxu0
        %vm354 = vcmask 27648
        %355 = vst.msk [vmem:[%s192] sm:$0xf] %vm354, %v351
        %s356 = scalar_lea.vmem %s164, 16 [#allocation2]
        %v357 = vld [vmem:[%s356] sm:$0xff]
        %v358 = vld [vmem:[%s356 + $0x8] sm:$0xff]
        %v360 = vsel %vm199, %v357, 0
        %v363 = vsel %vm199, %v358, 0
        %365 = vmatprep.subr.mxu0 0.0
        %366 = vmatpush1.msra.mxu0 0.0
        %367 = vmatprep.subr.mxu0 0.0
        %368 = vmatpush1.msra.mxu0 0.0
        %369 = vmatprep.subr.mxu0 0.0
        %370 = vmatpush1.msra.mxu0 0.0
        %371 = vmatprep.subr.mxu0 0.0
        %372 = vmatpush1.msra.mxu0 0.0
        %373 = vmatprep.subr.mxu0 0.0
        %374 = vmatpush1.msra.mxu0 0.0
        %375 = vmatprep.subr.mxu0 0.0
        %376 = vmatpush1.msra.mxu0 0.0
        %377 = vmatprep.subr.mxu0 0.0
        %378 = vmatpush1.msra.mxu0 0.0
        %379 = vmatprep.subr.mxu0 0.0
        %380 = vmatpush1.msra.mxu0 0.0
        %381 = vmatprep.subr.mxu0 0.0
        %382 = vmatpush1.msra.mxu0 0.0
        %383 = vmatprep.subr.mxu0 0.0
        %384 = vmatpush1.msra.mxu0 0.0
        %385 = vmatprep.subr.mxu0 0.0
        %386 = vmatpush1.msra.mxu0 0.0
        %387 = vmatprep.subr.mxu0 0.0
        %388 = vmatpush1.msra.mxu0 0.0
        %389 = vmatprep.subr.mxu0 0.0
        %390 = vmatpush1.msra.mxu0 0.0
        %391 = vmatprep.subr.mxu0 0.0
        %392 = vmatpush1.msra.mxu0 0.0
        %393 = vmatprep.subr.mxu0 0.0
        %394 = vmatpush1.msra.mxu0 %v196
        %395 = vmatprep.subr.mxu0 0.0
        %396 = vmatpush1.msra.mxu0 %v195
        %397 = vmatprep.subr.mxu0 0.0
        %398 = vmatpush2.msra.mxu0 0.0
        %399 = vmatprep.subr.mxu0 0.0
        %400 = vmatpush2.msra.mxu0 0.0
        %401 = vmatprep.subr.mxu0 0.0
        %402 = vmatpush2.msra.mxu0 0.0
        %403 = vmatprep.subr.mxu0 0.0
        %404 = vmatpush2.msra.mxu0 0.0
        %405 = vmatprep.subr.mxu0 0.0
        %406 = vmatpush2.msra.mxu0 0.0
        %407 = vmatprep.subr.mxu0 0.0
        %408 = vmatpush2.msra.mxu0 0.0
        %409 = vmatprep.subr.mxu0 0.0
        %410 = vmatpush2.msra.mxu0 0.0
        %411 = vmatprep.subr.mxu0 0.0
        %412 = vmatpush2.msra.mxu0 0.0
        %413 = vmatprep.subr.mxu0 0.0
        %414 = vmatpush2.msra.mxu0 0.0
        %415 = vmatprep.subr.mxu0 0.0
        %416 = vmatpush2.msra.mxu0 0.0
        %417 = vmatprep.subr.mxu0 0.0
        %418 = vmatpush2.msra.mxu0 0.0
        %419 = vmatprep.subr.mxu0 0.0
        %420 = vmatpush2.msra.mxu0 0.0
        %421 = vmatprep.subr.mxu0 0.0
        %422 = vmatpush2.msra.mxu0 0.0
        %423 = vmatprep.subr.mxu0 0.0
        %424 = vmatpush2.msra.mxu0 0.0
        %425 = vmatprep.subr.mxu0 0.0
        %426 = vmatpush2.msra.mxu0 0.0
        %427 = vmatprep.subr.mxu0 0.0
        %428 = vmatpush2.msra.mxu0 0.0
        %429 = vmatprep.mubr.f32.mxu0 0.0
        %430 = vmatmul.mubr.f32.gmra.mxu0 %v360
        %v431 = vpop.f32.mrf.mxu0
        %v432 = vadd.f32 0.0, %v431
        %v433 = vpop.f32.mrf.mxu0
        %434 = vmatprep.mubr.f32.mxu0 0.0
        %435 = vmatmul.mubr.f32.gmra.mxu0 %v363
        %v436 = vpop.f32.mrf.mxu0
        %v437 = vadd.f32 0.0, %v436
        %v438 = vpop.f32.mrf.mxu0
        %439 = vdwg.mxu0
        %440 = vmatprep.subr.mxu0 0.0
        %441 = vmatpush1.msra.mxu0 0.0
        %442 = vmatprep.subr.mxu0 0.0
        %443 = vmatpush1.msra.mxu0 0.0
        %444 = vmatprep.subr.mxu0 0.0
        %445 = vmatpush1.msra.mxu0 0.0
        %446 = vmatprep.subr.mxu0 0.0
        %447 = vmatpush1.msra.mxu0 0.0
        %448 = vmatprep.subr.mxu0 0.0
        %449 = vmatpush1.msra.mxu0 0.0
        %450 = vmatprep.subr.mxu0 0.0
        %451 = vmatpush1.msra.mxu0 0.0
        %452 = vmatprep.subr.mxu0 0.0
        %453 = vmatpush1.msra.mxu0 0.0
        %454 = vmatprep.subr.mxu0 0.0
        %455 = vmatpush1.msra.mxu0 0.0
        %456 = vmatprep.subr.mxu0 0.0
        %457 = vmatpush1.msra.mxu0 0.0
        %458 = vmatprep.subr.mxu0 0.0
        %459 = vmatpush1.msra.mxu0 0.0
        %460 = vmatprep.subr.mxu0 0.0
        %461 = vmatpush1.msra.mxu0 0.0
        %462 = vmatprep.subr.mxu0 0.0
        %463 = vmatpush1.msra.mxu0 0.0
        %464 = vmatprep.subr.mxu0 0.0
        %465 = vmatpush1.msra.mxu0 0.0
        %466 = vmatprep.subr.mxu0 0.0
        %467 = vmatpush1.msra.mxu0 0.0
        %468 = vmatprep.subr.mxu0 0.0
        %469 = vmatpush1.msra.mxu0 %v437
        %470 = vmatprep.subr.mxu0 0.0
        %471 = vmatpush1.msra.mxu0 %v432
        %472 = vmatprep.subr.mxu0 0.0
        %473 = vmatpush2.msra.mxu0 0.0
        %474 = vmatprep.subr.mxu0 0.0
        %475 = vmatpush2.msra.mxu0 0.0
        %476 = vmatprep.subr.mxu0 0.0
        %477 = vmatpush2.msra.mxu0 0.0
        %478 = vmatprep.subr.mxu0 0.0
        %479 = vmatpush2.msra.mxu0 0.0
        %480 = vmatprep.subr.mxu0 0.0
        %481 = vmatpush2.msra.mxu0 0.0
        %482 = vmatprep.subr.mxu0 0.0
        %483 = vmatpush2.msra.mxu0 0.0
        %484 = vmatprep.subr.mxu0 0.0
        %485 = vmatpush2.msra.mxu0 0.0
        %486 = vmatprep.subr.mxu0 0.0
        %487 = vmatpush2.msra.mxu0 0.0
        %488 = vmatprep.subr.mxu0 0.0
        %489 = vmatpush2.msra.mxu0 0.0
        %490 = vmatprep.subr.mxu0 0.0
        %491 = vmatpush2.msra.mxu0 0.0
        %492 = vmatprep.subr.mxu0 0.0
        %493 = vmatpush2.msra.mxu0 0.0
        %494 = vmatprep.subr.mxu0 0.0
        %495 = vmatpush2.msra.mxu0 0.0
        %496 = vmatprep.subr.mxu0 0.0
        %497 = vmatpush2.msra.mxu0 0.0
        %498 = vmatprep.subr.mxu0 0.0
        %499 = vmatpush2.msra.mxu0 0.0
        %500 = vmatprep.subr.mxu0 0.0
        %501 = vmatpush2.msra.mxu0 0.0
        %502 = vmatprep.subr.mxu0 0.0
        %503 = vmatpush2.msra.mxu0 0.0
        %504 = vmatprep.mubr.f32.mxu0 0.0
        %505 = vmatmul.mubr.f32.gmra.mxu0 %v282
        %v506 = vpop.f32.mrf.mxu0
        %v507 = vadd.f32 0.0, %v506
        %v508 = vpop.f32.mrf.mxu0
        %509 = vdwg.mxu0
        %s510 = scalar_lea.vmem %s192, 4
        %511 = vst.msk [vmem:[%s510] sm:$0xf] %vm354, %v507
        %s512 = scalar_lea.vmem %s164, 32 [#allocation2]
        %v513 = vld [vmem:[%s512] sm:$0xff]
        %v514 = vld [vmem:[%s512 + $0x8] sm:$0xff]
        %v516 = vsel %vm199, %v513, 0
        %v519 = vsel %vm199, %v514, 0
        %521 = vmatprep.subr.mxu0 0.0
        %522 = vmatpush1.msra.mxu0 0.0
        %523 = vmatprep.subr.mxu0 0.0
        %524 = vmatpush1.msra.mxu0 0.0
        %525 = vmatprep.subr.mxu0 0.0
        %526 = vmatpush1.msra.mxu0 0.0
        %527 = vmatprep.subr.mxu0 0.0
        %528 = vmatpush1.msra.mxu0 0.0
        %529 = vmatprep.subr.mxu0 0.0
        %530 = vmatpush1.msra.mxu0 0.0
        %531 = vmatprep.subr.mxu0 0.0
        %532 = vmatpush1.msra.mxu0 0.0
        %533 = vmatprep.subr.mxu0 0.0
        %534 = vmatpush1.msra.mxu0 0.0
        %535 = vmatprep.subr.mxu0 0.0
        %536 = vmatpush1.msra.mxu0 0.0
        %537 = vmatprep.subr.mxu0 0.0
        %538 = vmatpush1.msra.mxu0 0.0
        %539 = vmatprep.subr.mxu0 0.0
        %540 = vmatpush1.msra.mxu0 0.0
        %541 = vmatprep.subr.mxu0 0.0
        %542 = vmatpush1.msra.mxu0 0.0
        %543 = vmatprep.subr.mxu0 0.0
        %544 = vmatpush1.msra.mxu0 0.0
        %545 = vmatprep.subr.mxu0 0.0
        %546 = vmatpush1.msra.mxu0 0.0
        %547 = vmatprep.subr.mxu0 0.0
        %548 = vmatpush1.msra.mxu0 0.0
        %549 = vmatprep.subr.mxu0 0.0
        %550 = vmatpush1.msra.mxu0 %v196
        %551 = vmatprep.subr.mxu0 0.0
        %552 = vmatpush1.msra.mxu0 %v195
        %553 = vmatprep.subr.mxu0 0.0
        %554 = vmatpush2.msra.mxu0 0.0
        %555 = vmatprep.subr.mxu0 0.0
        %556 = vmatpush2.msra.mxu0 0.0
        %557 = vmatprep.subr.mxu0 0.0
        %558 = vmatpush2.msra.mxu0 0.0
        %559 = vmatprep.subr.mxu0 0.0
        %560 = vmatpush2.msra.mxu0 0.0
        %561 = vmatprep.subr.mxu0 0.0
        %562 = vmatpush2.msra.mxu0 0.0
        %563 = vmatprep.subr.mxu0 0.0
        %564 = vmatpush2.msra.mxu0 0.0
        %565 = vmatprep.subr.mxu0 0.0
        %566 = vmatpush2.msra.mxu0 0.0
        %567 = vmatprep.subr.mxu0 0.0
        %568 = vmatpush2.msra.mxu0 0.0
        %569 = vmatprep.subr.mxu0 0.0
        %570 = vmatpush2.msra.mxu0 0.0
        %571 = vmatprep.subr.mxu0 0.0
        %572 = vmatpush2.msra.mxu0 0.0
        %573 = vmatprep.subr.mxu0 0.0
        %574 = vmatpush2.msra.mxu0 0.0
        %575 = vmatprep.subr.mxu0 0.0
        %576 = vmatpush2.msra.mxu0 0.0
        %577 = vmatprep.subr.mxu0 0.0
        %578 = vmatpush2.msra.mxu0 0.0
        %579 = vmatprep.subr.mxu0 0.0
        %580 = vmatpush2.msra.mxu0 0.0
        %581 = vmatprep.subr.mxu0 0.0
        %582 = vmatpush2.msra.mxu0 0.0
        %583 = vmatprep.subr.mxu0 0.0
        %584 = vmatpush2.msra.mxu0 0.0
        %585 = vmatprep.mubr.f32.mxu0 0.0
        %586 = vmatmul.mubr.f32.gmra.mxu0 %v516
        %v587 = vpop.f32.mrf.mxu0
        %v588 = vadd.f32 0.0, %v587
        %v589 = vpop.f32.mrf.mxu0
        %590 = vmatprep.mubr.f32.mxu0 0.0
        %591 = vmatmul.mubr.f32.gmra.mxu0 %v519
        %v592 = vpop.f32.mrf.mxu0
        %v593 = vadd.f32 0.0, %v592
        %v594 = vpop.f32.mrf.mxu0
        %595 = vdwg.mxu0
        %596 = vmatprep.subr.mxu0 0.0
        %597 = vmatpush1.msra.mxu0 0.0
        %598 = vmatprep.subr.mxu0 0.0
        %599 = vmatpush1.msra.mxu0 0.0
        %600 = vmatprep.subr.mxu0 0.0
        %601 = vmatpush1.msra.mxu0 0.0
        %602 = vmatprep.subr.mxu0 0.0
        %603 = vmatpush1.msra.mxu0 0.0
        %604 = vmatprep.subr.mxu0 0.0
        %605 = vmatpush1.msra.mxu0 0.0
        %606 = vmatprep.subr.mxu0 0.0
        %607 = vmatpush1.msra.mxu0 0.0
        %608 = vmatprep.subr.mxu0 0.0
        %609 = vmatpush1.msra.mxu0 0.0
        %610 = vmatprep.subr.mxu0 0.0
        %611 = vmatpush1.msra.mxu0 0.0
        %612 = vmatprep.subr.mxu0 0.0
        %613 = vmatpush1.msra.mxu0 0.0
        %614 = vmatprep.subr.mxu0 0.0
        %615 = vmatpush1.msra.mxu0 0.0
        %616 = vmatprep.subr.mxu0 0.0
        %617 = vmatpush1.msra.mxu0 0.0
        %618 = vmatprep.subr.mxu0 0.0
        %619 = vmatpush1.msra.mxu0 0.0
        %620 = vmatprep.subr.mxu0 0.0
        %621 = vmatpush1.msra.mxu0 0.0
        %622 = vmatprep.subr.mxu0 0.0
        %623 = vmatpush1.msra.mxu0 0.0
        %624 = vmatprep.subr.mxu0 0.0
        %625 = vmatpush1.msra.mxu0 %v593
        %626 = vmatprep.subr.mxu0 0.0
        %627 = vmatpush1.msra.mxu0 %v588
        %628 = vmatprep.subr.mxu0 0.0
        %629 = vmatpush2.msra.mxu0 0.0
        %630 = vmatprep.subr.mxu0 0.0
        %631 = vmatpush2.msra.mxu0 0.0
        %632 = vmatprep.subr.mxu0 0.0
        %633 = vmatpush2.msra.mxu0 0.0
        %634 = vmatprep.subr.mxu0 0.0
        %635 = vmatpush2.msra.mxu0 0.0
        %636 = vmatprep.subr.mxu0 0.0
        %637 = vmatpush2.msra.mxu0 0.0
        %638 = vmatprep.subr.mxu0 0.0
        %639 = vmatpush2.msra.mxu0 0.0
        %640 = vmatprep.subr.mxu0 0.0
        %641 = vmatpush2.msra.mxu0 0.0
        %642 = vmatprep.subr.mxu0 0.0
        %643 = vmatpush2.msra.mxu0 0.0
        %644 = vmatprep.subr.mxu0 0.0
        %645 = vmatpush2.msra.mxu0 0.0
        %646 = vmatprep.subr.mxu0 0.0
        %647 = vmatpush2.msra.mxu0 0.0
        %648 = vmatprep.subr.mxu0 0.0
        %649 = vmatpush2.msra.mxu0 0.0
        %650 = vmatprep.subr.mxu0 0.0
        %651 = vmatpush2.msra.mxu0 0.0
        %652 = vmatprep.subr.mxu0 0.0
        %653 = vmatpush2.msra.mxu0 0.0
        %654 = vmatprep.subr.mxu0 0.0
        %655 = vmatpush2.msra.mxu0 0.0
        %656 = vmatprep.subr.mxu0 0.0
        %657 = vmatpush2.msra.mxu0 0.0
        %658 = vmatprep.subr.mxu0 0.0
        %659 = vmatpush2.msra.mxu0 0.0
        %660 = vmatprep.mubr.f32.mxu0 0.0
        %661 = vmatmul.mubr.f32.gmra.mxu0 %v282
        %v662 = vpop.f32.mrf.mxu0
        %v663 = vadd.f32 0.0, %v662
        %v664 = vpop.f32.mrf.mxu0
        %665 = vdwg.mxu0
        %s666 = scalar_lea.vmem %s192, 8
        %667 = vst.msk [vmem:[%s666] sm:$0xf] %vm354, %v663
        %s668 = scalar_lea.vmem %s164, 48 [#allocation2]
        %v669 = vld [vmem:[%s668] sm:$0xff]
        %v670 = vld [vmem:[%s668 + $0x8] sm:$0xff]
        %v672 = vsel %vm199, %v669, 0
        %v675 = vsel %vm199, %v670, 0
        %677 = vmatprep.subr.mxu0 0.0
        %678 = vmatpush1.msra.mxu0 0.0
        %679 = vmatprep.subr.mxu0 0.0
        %680 = vmatpush1.msra.mxu0 0.0
        %681 = vmatprep.subr.mxu0 0.0
        %682 = vmatpush1.msra.mxu0 0.0
        %683 = vmatprep.subr.mxu0 0.0
        %684 = vmatpush1.msra.mxu0 0.0
        %685 = vmatprep.subr.mxu0 0.0
        %686 = vmatpush1.msra.mxu0 0.0
        %687 = vmatprep.subr.mxu0 0.0
        %688 = vmatpush1.msra.mxu0 0.0
        %689 = vmatprep.subr.mxu0 0.0
        %690 = vmatpush1.msra.mxu0 0.0
        %691 = vmatprep.subr.mxu0 0.0
        %692 = vmatpush1.msra.mxu0 0.0
        %693 = vmatprep.subr.mxu0 0.0
        %694 = vmatpush1.msra.mxu0 0.0
        %695 = vmatprep.subr.mxu0 0.0
        %696 = vmatpush1.msra.mxu0 0.0
        %697 = vmatprep.subr.mxu0 0.0
        %698 = vmatpush1.msra.mxu0 0.0
        %699 = vmatprep.subr.mxu0 0.0
        %700 = vmatpush1.msra.mxu0 0.0
        %701 = vmatprep.subr.mxu0 0.0
        %702 = vmatpush1.msra.mxu0 0.0
        %703 = vmatprep.subr.mxu0 0.0
        %704 = vmatpush1.msra.mxu0 0.0
        %705 = vmatprep.subr.mxu0 0.0
        %706 = vmatpush1.msra.mxu0 %v196
        %707 = vmatprep.subr.mxu0 0.0
        %708 = vmatpush1.msra.mxu0 %v195
        %709 = vmatprep.subr.mxu0 0.0
        %710 = vmatpush2.msra.mxu0 0.0
        %711 = vmatprep.subr.mxu0 0.0
        %712 = vmatpush2.msra.mxu0 0.0
        %713 = vmatprep.subr.mxu0 0.0
        %714 = vmatpush2.msra.mxu0 0.0
        %715 = vmatprep.subr.mxu0 0.0
        %716 = vmatpush2.msra.mxu0 0.0
        %717 = vmatprep.subr.mxu0 0.0
        %718 = vmatpush2.msra.mxu0 0.0
        %719 = vmatprep.subr.mxu0 0.0
        %720 = vmatpush2.msra.mxu0 0.0
        %721 = vmatprep.subr.mxu0 0.0
        %722 = vmatpush2.msra.mxu0 0.0
        %723 = vmatprep.subr.mxu0 0.0
        %724 = vmatpush2.msra.mxu0 0.0
        %725 = vmatprep.subr.mxu0 0.0
        %726 = vmatpush2.msra.mxu0 0.0
        %727 = vmatprep.subr.mxu0 0.0
        %728 = vmatpush2.msra.mxu0 0.0
        %729 = vmatprep.subr.mxu0 0.0
        %730 = vmatpush2.msra.mxu0 0.0
        %731 = vmatprep.subr.mxu0 0.0
        %732 = vmatpush2.msra.mxu0 0.0
        %733 = vmatprep.subr.mxu0 0.0
        %734 = vmatpush2.msra.mxu0 0.0
        %735 = vmatprep.subr.mxu0 0.0
        %736 = vmatpush2.msra.mxu0 0.0
        %737 = vmatprep.subr.mxu0 0.0
        %738 = vmatpush2.msra.mxu0 0.0
        %739 = vmatprep.subr.mxu0 0.0
        %740 = vmatpush2.msra.mxu0 0.0
        %741 = vmatprep.mubr.f32.mxu0 0.0
        %742 = vmatmul.mubr.f32.gmra.mxu0 %v672
        %v743 = vpop.f32.mrf.mxu0
        %v744 = vadd.f32 0.0, %v743
        %v745 = vpop.f32.mrf.mxu0
        %746 = vmatprep.mubr.f32.mxu0 0.0
        %747 = vmatmul.mubr.f32.gmra.mxu0 %v675
        %v748 = vpop.f32.mrf.mxu0
        %v749 = vadd.f32 0.0, %v748
        %v750 = vpop.f32.mrf.mxu0
        %751 = vdwg.mxu0
        %752 = vmatprep.subr.mxu0 0.0
        %753 = vmatpush1.msra.mxu0 0.0
        %754 = vmatprep.subr.mxu0 0.0
        %755 = vmatpush1.msra.mxu0 0.0
        %756 = vmatprep.subr.mxu0 0.0
        %757 = vmatpush1.msra.mxu0 0.0
        %758 = vmatprep.subr.mxu0 0.0
        %759 = vmatpush1.msra.mxu0 0.0
        %760 = vmatprep.subr.mxu0 0.0
        %761 = vmatpush1.msra.mxu0 0.0
        %762 = vmatprep.subr.mxu0 0.0
        %763 = vmatpush1.msra.mxu0 0.0
        %764 = vmatprep.subr.mxu0 0.0
        %765 = vmatpush1.msra.mxu0 0.0
        %766 = vmatprep.subr.mxu0 0.0
        %767 = vmatpush1.msra.mxu0 0.0
        %768 = vmatprep.subr.mxu0 0.0
        %769 = vmatpush1.msra.mxu0 0.0
        %770 = vmatprep.subr.mxu0 0.0
        %771 = vmatpush1.msra.mxu0 0.0
        %772 = vmatprep.subr.mxu0 0.0
        %773 = vmatpush1.msra.mxu0 0.0
        %774 = vmatprep.subr.mxu0 0.0
        %775 = vmatpush1.msra.mxu0 0.0
        %776 = vmatprep.subr.mxu0 0.0
        %777 = vmatpush1.msra.mxu0 0.0
        %778 = vmatprep.subr.mxu0 0.0
        %779 = vmatpush1.msra.mxu0 0.0
        %780 = vmatprep.subr.mxu0 0.0
        %781 = vmatpush1.msra.mxu0 %v749
        %782 = vmatprep.subr.mxu0 0.0
        %783 = vmatpush1.msra.mxu0 %v744
        %784 = vmatprep.subr.mxu0 0.0
        %785 = vmatpush2.msra.mxu0 0.0
        %786 = vmatprep.subr.mxu0 0.0
        %787 = vmatpush2.msra.mxu0 0.0
        %788 = vmatprep.subr.mxu0 0.0
        %789 = vmatpush2.msra.mxu0 0.0
        %790 = vmatprep.subr.mxu0 0.0
        %791 = vmatpush2.msra.mxu0 0.0
        %792 = vmatprep.subr.mxu0 0.0
        %793 = vmatpush2.msra.mxu0 0.0
        %794 = vmatprep.subr.mxu0 0.0
        %795 = vmatpush2.msra.mxu0 0.0
        %796 = vmatprep.subr.mxu0 0.0
        %797 = vmatpush2.msra.mxu0 0.0
        %798 = vmatprep.subr.mxu0 0.0
        %799 = vmatpush2.msra.mxu0 0.0
        %800 = vmatprep.subr.mxu0 0.0
        %801 = vmatpush2.msra.mxu0 0.0
        %802 = vmatprep.subr.mxu0 0.0
        %803 = vmatpush2.msra.mxu0 0.0
        %804 = vmatprep.subr.mxu0 0.0
        %805 = vmatpush2.msra.mxu0 0.0
        %806 = vmatprep.subr.mxu0 0.0
        %807 = vmatpush2.msra.mxu0 0.0
        %808 = vmatprep.subr.mxu0 0.0
        %809 = vmatpush2.msra.mxu0 0.0
        %810 = vmatprep.subr.mxu0 0.0
        %811 = vmatpush2.msra.mxu0 0.0
        %812 = vmatprep.subr.mxu0 0.0
        %813 = vmatpush2.msra.mxu0 0.0
        %814 = vmatprep.subr.mxu0 0.0
        %815 = vmatpush2.msra.mxu0 0.0
        %816 = vmatprep.mubr.f32.mxu0 0.0
        %817 = vmatmul.mubr.f32.gmra.mxu0 %v282
        %v818 = vpop.f32.mrf.mxu0
        %v819 = vadd.f32 0.0, %v818
        %v820 = vpop.f32.mrf.mxu0
        %821 = vdwg.mxu0
        %s822 = scalar_lea.vmem %s192, 12
        %823 = vst.msk [vmem:[%s822] sm:$0xf] %vm354, %v819
        %s824 = smul.u32 4, %s17
        %p825 = scmp.lt.s32.totalorder %s824, 7
        %s826 = scalar_select %p825, %s824, 7
        %s827 = smul.addr %s826, 4
        %s828 = scalar_lea.vmem %s3, %s827
        // Predicated region
        $region37: #{tpu_custom_call.1} parent=31 // pred_check
          %p829 = pneg %p103
        $region38: #{tpu_custom_call.1} parent=31 // pred_check_branch
          %831 = sbr.rel (%p829) target = $region40
        $region39: #{tpu_custom_call.1} parent=31 // pred_region
          %s832 = smul.u32 4, %s17
        $region40: #{tpu_custom_call.1} parent=31 // pred_fallthru
          _
      $region32: #{tpu_custom_call.1} parent=5 // pred_fallthru
        _
      %p833 = scmp.le.s32.totalorder 2, %s12
      // Predicated region
      $region41: #{tpu_custom_call.1} parent=5 // pred_check
        %p834 = pneg %p833
      $region42: #{tpu_custom_call.1} parent=5 // pred_check_branch
        %836 = sbr.rel (%p834) target = $region44
      $region43: #{tpu_custom_call.1} parent=5 // pred_region
        %s837 = ssub.s32 %s12, 2
        // Predicated region
        $region45: #{tpu_custom_call.1} parent=43 // pred_check
          %p838 = pneg %p109
        $region46: #{tpu_custom_call.1} parent=43 // pred_check_branch
          %840 = sbr.rel (%p838) target = $region48
        $region47: #{tpu_custom_call.1} parent=43 // pred_region
          %s841 = smul.u32 4, %s18
          %p842 = scmp.lt.s32.totalorder %s841, 7
          %s843 = scalar_select %p842, %s841, 7
          %s844 = smul.addr %s843, 4
          %s845 = scalar_lea.vmem %s3, %s844
        $region48: #{tpu_custom_call.1} parent=43 // pred_fallthru
          _
      $region44: #{tpu_custom_call.1} parent=5 // pred_fallthru
        _
    $region6: #{tpu_custom_call.1} parent=1 // loop_footer
      %s16 = sadd.s32 1, %s12
    $region7: #{tpu_custom_call.1} parent=1 // loop_footer_branch
      %11 = sbr.rel target = $region3
    $region8: #{tpu_custom_call.1} parent=1 // loop_exit
      _
    %846 = vsyncpa [#allocation3], 1
    %s847 = scalar_lea.sflag [#allocation3], 1
    %848 = vsyncpa %s847, 1

</llo_original>
